<compile_context>
chip_gen: v6e
topology: v6e:2x2x1
jax: 0.10.0
libtpu: 0.0.40
codegen_flags: <defaults>
</compile_context>

<pallas_src>
import functools
import math

import jax
import jax.numpy as jnp
from jax.experimental import pallas as pl
from jax.experimental.pallas import tpu as pltpu


# ---------------------------------------------------------------------------
# Parameter / buffer setup (mirrors PositionalEncoding.__init__)
# ---------------------------------------------------------------------------
def make_positional_encoding(d_model: int, max_seq_len: int = 512) -> jnp.ndarray:
    """Builds the [max_seq_len, d_model] sinusoidal table (float32)."""
    position = jnp.arange(0, max_seq_len, dtype=jnp.float32)[:, None]            # [L, 1]
    div_term = jnp.exp(
        jnp.arange(0, d_model, 2, dtype=jnp.float32) * -(math.log(10000.0) / d_model)
    )                                                                             # [ceil(D/2)]
    angles = position * div_term                                                  # [L, ceil(D/2)]
    pe = jnp.zeros((max_seq_len, d_model), dtype=jnp.float32)
    pe = pe.at[:, 0::2].set(jnp.sin(angles))
    if d_model % 2 == 1:
        pe = pe.at[:, 1::2].set(jnp.cos(angles[:, :-1]))
    else:
        pe = pe.at[:, 1::2].set(jnp.cos(angles))
    return pe


# ---------------------------------------------------------------------------
# Tile selection: [B, N] lane-flattened layout, ~2 MiB blocks.
# ---------------------------------------------------------------------------
def _choose_tiles(B: int, N: int, itemsize: int, target_bytes: int = 2 * 1024 * 1024):
    """Returns (TB, TL): sublane (batch) and lane tile sizes.

    Legality: TB is either the full batch dim or a multiple of 8; TL is either
    the full flattened row (S*D) or a multiple of 128.  Block bytes stay near
    `target_bytes` so in/out double-buffering fits comfortably in VMEM on
    v5e/v6e (128 MiB) and v7x (64 MiB).
    """
    budget = max(1024, target_bytes // itemsize)      # elements per block
    rows = budget // max(N, 1)                        # full rows that fit
    if N <= budget and B <= max(rows, 1):
        return B, N                                   # whole array in one block shape
    if N <= budget and rows >= 8:
        return (rows // 8) * 8, N                     # full rows, batch tile multiple of 8
    # Rows are large: chunk the lane axis in multiples of 128.
    TB = B if B <= 8 else 8
    TL = max(128, (budget // TB) // 128 * 128)
    TL = min(TL, N)
    return TB, TL


# ---------------------------------------------------------------------------
# Pallas kernels (operate on lane-flattened 2D tiles)
# ---------------------------------------------------------------------------
def _pe_add_kernel(x_ref, pe_ref, o_ref):
    # x_ref/o_ref: (TB, TL); pe_ref: (1, TL) -> broadcasts over the batch tile.
    o_ref[...] = x_ref[...] + pe_ref[...]


def _pe_add_dropout_kernel(x_ref, pe_ref, bits_ref, o_ref, *, threshold: int, scale: float):
    # Inverted dropout with an integer-threshold mask on uint32 random bits.
    y = x_ref[...] + pe_ref[...]
    keep = bits_ref[...] >= jnp.uint32(threshold)
    o_ref[...] = jnp.where(keep, y * jnp.asarray(scale, y.dtype), jnp.zeros_like(y))


# ---------------------------------------------------------------------------
# Wrapper
# ---------------------------------------------------------------------------
def positional_encoding_forward(
    x: jnp.ndarray,
    pe_table: jnp.ndarray,
    *,
    dropout_rate: float = 0.1,
    training: bool = False,
    rng_key=None,
) -> jnp.ndarray:
    """x: [B, S, D].  Returns dropout(x + pe[:S]) with the PyTorch semantics."""
    B, S, D = x.shape
    N = S * D
    itemsize = jnp.dtype(x.dtype).itemsize

    # Lane-flatten: [B, S, D] -> [B, S*D]; pe broadcast row -> [1, S*D] in x.dtype.
    x2 = x.reshape(B, N)
    pe2 = pe_table[:S, :].astype(x.dtype).reshape(1, N)

    TB, TL = _choose_tiles(B, N, itemsize)
    grid = (pl.cdiv(B, TB), pl.cdiv(N, TL))

    x_spec = pl.BlockSpec((TB, TL), lambda i, j: (i, j))
    pe_spec = pl.BlockSpec((1, TL), lambda i, j: (0, j))
    out_spec = pl.BlockSpec((TB, TL), lambda i, j: (i, j))
    out_shape = jax.ShapeDtypeStruct((B, N), x.dtype)

    compiler_params = pltpu.CompilerParams(
        dimension_semantics=("parallel", "parallel"),
    )

    apply_dropout = training and dropout_rate > 0.0

    if not apply_dropout:
        cost = pl.CostEstimate(
            flops=B * N,
            transcendentals=0,
            bytes_accessed=2 * B * N * itemsize + N * itemsize,
        )
        out2 = pl.pallas_call(
            _pe_add_kernel,
            out_shape=out_shape,
            grid=grid,
            in_specs=[x_spec, pe_spec],
            out_specs=out_spec,
            compiler_params=compiler_params,
            cost_estimate=cost,
        )(x2, pe2)
        return out2.reshape(B, S, D)

    # ---- training path: inverted dropout -----------------------------------
    if rng_key is None:
        rng_key = jax.random.PRNGKey(0)
    bits = jax.random.bits(rng_key, (B, N), dtype=jnp.uint32)
    bits_spec = pl.BlockSpec((TB, TL), lambda i, j: (i, j))

    threshold = min(int(dropout_rate * (2.0 ** 32)), 2 ** 32 - 1)  # keep iff bits >= threshold
    scale = 1.0 / (1.0 - dropout_rate)

    kernel = functools.partial(_pe_add_dropout_kernel, threshold=threshold, scale=scale)
    cost = pl.CostEstimate(
        flops=3 * B * N,
        transcendentals=0,
        bytes_accessed=2 * B * N * itemsize + N * itemsize + B * N * 4,
    )
    out2 = pl.pallas_call(
        kernel,
        out_shape=out_shape,
        grid=grid,
        in_specs=[x_spec, pe_spec, bits_spec],
        out_specs=out_spec,
        compiler_params=compiler_params,
        cost_estimate=cost,
    )(x2, pe2, bits)
    return out2.reshape(B, S, D)


# ---------------------------------------------------------------------------
# Main
# ---------------------------------------------------------------------------
if __name__ == "__main__":
    # Small shapes consistent with the module's forward: x [B, S, D].
    B, S, D = 2, 8, 32
    MAX_SEQ_LEN = 64
    DROPOUT = 0.1

    key = jax.random.PRNGKey(0)
    x = jax.random.normal(key, (B, S, D), dtype=jnp.float32)

    pe_table = make_positional_encoding(D, MAX_SEQ_LEN)

    # Eval-mode forward (dropout is identity, matching module.eval()).
    out = positional_encoding_forward(x, pe_table, dropout_rate=DROPOUT, training=False)
    out = jax.block_until_ready(out)

    # Pure-JAX reference.
    ref = x + pe_table[None, :S, :]
    assert out.shape == (B, S, D)
    assert out.dtype == x.dtype
    assert jnp.allclose(out, ref, atol=1e-6, rtol=1e-6), "mismatch vs reference"

    # Training/dropout path: every output is either 0 or the inverse-scaled ref.
    out_tr = positional_encoding_forward(
        x, pe_table, dropout_rate=DROPOUT, training=True, rng_key=jax.random.PRNGKey(123)
    )
    out_tr = jax.block_until_ready(out_tr)
    scaled_ref = ref / (1.0 - DROPOUT)
    ok = jnp.all(
        jnp.isclose(out_tr, 0.0, atol=1e-6)
        | jnp.isclose(out_tr, scaled_ref, atol=1e-5, rtol=1e-5)
    )
    assert bool(ok), "dropout path produced values that are neither zero nor scaled"

    print("KERNEL_OK")
</pallas_src>

<mosaic_0001>
module attributes {stable_mosaic.version = 11 : i64} {
  func.func @_pe_add_kernel(%arg0: i32, %arg1: i32, %arg2: memref<2x256xf32, #tpu.memory_space<vmem>>, %arg3: memref<1x256xf32, #tpu.memory_space<vmem>>, %arg4: memref<2x256xf32, #tpu.memory_space<vmem>>) attributes {dimension_semantics = [#tpu.dimension_semantics<parallel>, #tpu.dimension_semantics<parallel>], iteration_bounds = array<i64: 1, 1>, scalar_prefetch = 0 : i64, scratch_operands = 0 : i64, tpu.core_type = #tpu.core_type<tc>, window_params = [{transform_indices = @transform_0, window_bounds = array<i64: 2, 256>}, {transform_indices = @transform_1, window_bounds = array<i64: 1, 256>}, {transform_indices = @transform_2, window_bounds = array<i64: 2, 256>}]} {
    %c0 = arith.constant 0 : index
    %c0_0 = arith.constant 0 : index
    %0 = vector.load %arg2[%c0, %c0_0] : memref<2x256xf32, #tpu.memory_space<vmem>>, vector<2x256xf32>
    %c0_1 = arith.constant 0 : index
    %c0_2 = arith.constant 0 : index
    %1 = vector.load %arg3[%c0_1, %c0_2] : memref<1x256xf32, #tpu.memory_space<vmem>>, vector<1x256xf32>
    %2 = vector.broadcast %1 : vector<1x256xf32> to vector<2x256xf32>
    %3 = arith.addf %0, %2 : vector<2x256xf32>
    %c0_3 = arith.constant 0 : index
    %c0_4 = arith.constant 0 : index
    %4 = vector.load %arg4[%c0_3, %c0_4] : memref<2x256xf32, #tpu.memory_space<vmem>>, vector<2x256xf32>
    tpu.vector_store %arg4[%c0_3, %c0_4], %3 {strides = array<i32>} : memref<2x256xf32, #tpu.memory_space<vmem>>, vector<2x256xf32>,
    return
  }
  func.func @transform_0(%arg0: i32, %arg1: i32) -> (i32, i32) {
    %c0_i32 = arith.constant 0 : i32
    return %arg0, %arg1 : i32, i32
  }
  func.func @transform_1(%arg0: i32, %arg1: i32) -> (i32, i32) {
    %c0_i32 = arith.constant 0 : i32
    %c0_i32_0 = arith.constant 0 : i32
    return %c0_i32, %arg1 : i32, i32
  }
  func.func @transform_2(%arg0: i32, %arg1: i32) -> (i32, i32) {
    %c0_i32 = arith.constant 0 : i32
    return %arg0, %arg1 : i32, i32
  }
}

</mosaic_0001>

<llo_original>
// kernel: tpu_custom_call.1
$region0: #{tpu_custom_call.1}
  #allocation0 [shape = 'u32[]', space=smem, size = 0x4, offset = 0x4, fixed_abs, tag = 'smem constant byte address 0x4 - core index']
  #allocation1 [shape = 'u32[144,128]{1,0:T(1,128)}', space=vmem, size = 0x12000, scoped, tag = 'internal scratch']
  %s0 = inlined_call_operand.hbm [shape: f32[2,256], index: 0, kind: input, shape index: {}]
  %s1 = inlined_call_operand.hbm [shape: f32[1,256], index: 1, kind: input, shape index: {}]
  %s2 = inlined_call_operand.hbm [shape: f32[2,256], index: 2, kind: output, shape index: {}]
  %s3 = sld [smem:[#allocation0]]
  $region26: #{tpu_custom_call.1} parent=0
    _
  %s5 = ssub.s32 1, %s3
  %s6 = scalar_select 0, %s5, %s3
  $region1: #{tpu_custom_call.1} parent=0
    #allocation2 [shape = 'u8[2048]{0}', space=vmem, size = 0x800, scoped, tag = 'input window, operand 0, single buffered']
    #allocation3 [shape = 's32[1]{0}', space=sflag, size = 0x4, scoped, tag = 'scoped memory for tpu_custom_call.1']
    #allocation4 [shape = 's32[1]{0}', space=sflag, size = 0x4, scoped, tag = 'scoped memory for tpu_custom_call.1']
    #allocation5 [shape = 'u8[1024]{0}', space=vmem, size = 0x400, scoped, tag = 'input window, operand 1, single buffered']
    #allocation6 [shape = 's32[1]{0}', space=sflag, size = 0x4, scoped, tag = 'scoped memory for tpu_custom_call.1']
    #allocation7 [shape = 'u8[2048]{0}', space=vmem, size = 0x800, scoped, tag = 'output window, operand 0, single buffered']
    %7 = vsyncpa [#allocation3], 0
    %8 = vsyncpa [#allocation6], 0
    %9 = vsyncpa [#allocation4], 0
    // Predicated region
    $region2: #{tpu_custom_call.1} parent=1 // pred_check
      _
    $region3: #{tpu_custom_call.1} parent=1 // pred_check_branch
      %11 = sbr.rel (0) target = $region5
    $region4: #{tpu_custom_call.1} parent=1 // pred_region
      %s13 = ssub.s32 64, 64
      %14 = vsyncadd [#allocation3], %s13
      %s16 = sshll.u32 [#allocation2], 4
      %s17 = int_to_ptr.vmem [resolvable:$true] %s16
      %19 = dma.hbm_to_vmem [thread:$0]  %s0, 64, %s17, [#allocation3]
    $region5: #{tpu_custom_call.1} parent=1 // pred_fallthru
      _
    // Predicated region
    $region6: #{tpu_custom_call.1} parent=1 // pred_check
      _
    $region7: #{tpu_custom_call.1} parent=1 // pred_check_branch
      %21 = sbr.rel (0) target = $region9
    $region8: #{tpu_custom_call.1} parent=1 // pred_region
      %s23 = ssub.s32 32, 32
      %24 = vsyncadd [#allocation6], %s23
      %s26 = sshll.u32 [#allocation5], 4
      %s27 = int_to_ptr.vmem [resolvable:$true] %s26
      %29 = dma.hbm_to_vmem [thread:$0]  %s1, 32, %s27, [#allocation6]
    $region9: #{tpu_custom_call.1} parent=1 // pred_fallthru
      _
    // Predicated region
    $region10: #{tpu_custom_call.1} parent=1 // pred_check
      _
    $region11: #{tpu_custom_call.1} parent=1 // pred_check_branch
      %31 = sbr.rel (0) target = $region13
    $region12: #{tpu_custom_call.1} parent=1 // pred_region
      %32 = dma.done [#allocation3], 64
    $region13: #{tpu_custom_call.1} parent=1 // pred_fallthru
      _
    // Predicated region
    $region14: #{tpu_custom_call.1} parent=1 // pred_check
      _
    $region15: #{tpu_custom_call.1} parent=1 // pred_check_branch
      %34 = sbr.rel (0) target = $region17
    $region16: #{tpu_custom_call.1} parent=1 // pred_region
      %35 = dma.done [#allocation6], 32
    $region17: #{tpu_custom_call.1} parent=1 // pred_fallthru
      _
    %v36 = vld [vmem:[#allocation2] sm:$0xf]
    %v37 = vld [vmem:[#allocation5] sm:$0x3]
    %v39 = vlaneseq
    %v40 = vshrl.u32 %v39, 7
    %v41 = vsub.s32 0, %v40
    %v42 = vrot.slane %v37, %v41
    %v43 = vlaneseq
    %v44 = vshrl.u32 %v43, 7
    %v45 = vsub.s32 1, %v44
    %v46 = vrot.slane %v37, %v45
    %v47 = vcombine.low %v42, %v46
    %v49 = vunpack.c.l.s4 1983009808
    %v50 = vunpack.c.0.s8 %v49
    %v51 = vlaneseq
    %v52 = vshrl.u32 %v51, 7
    %v53 = vsub.s32 %v50, %v52
    %v54 = vrot.slane %v47, %v53
    %v56 = vadd.f32 %v36, %v54
    %57 = vst [vmem:[#allocation7] sm:$0xf] %v56
    // Predicated region
    $region18: #{tpu_custom_call.1} parent=1 // pred_check
      _
    $region19: #{tpu_custom_call.1} parent=1 // pred_check_branch
      %59 = sbr.rel (0) target = $region21
    $region20: #{tpu_custom_call.1} parent=1 // pred_region
      %s61 = ssub.s32 64, 64
      %62 = vsyncadd [#allocation4], %s61
      %s64 = sshll.u32 [#allocation7], 4
      %s65 = int_to_ptr.vmem [resolvable:$true] %s64
      %67 = dma.vmem_to_hbm [thread:$0]  %s65, 64, %s2, [#allocation4]
    $region21: #{tpu_custom_call.1} parent=1 // pred_fallthru
      _
    // Predicated region
    $region22: #{tpu_custom_call.1} parent=1 // pred_check
      _
    $region23: #{tpu_custom_call.1} parent=1 // pred_check_branch
      %69 = sbr.rel (0) target = $region25
    $region24: #{tpu_custom_call.1} parent=1 // pred_region
      %70 = dma.done [#allocation4], 64
    $region25: #{tpu_custom_call.1} parent=1 // pred_fallthru
      _
    %71 = vsyncpa [#allocation3], 1
    %72 = vsyncpa [#allocation6], 1
    %73 = vsyncpa [#allocation4], 1

</llo_original>
